<compile_context>
chip_gen: v7x
topology: tpu7x:2x2x1
jax: 0.10.0
libtpu: 0.0.40
codegen_flags: <defaults>
</compile_context>

<pallas_src>
import functools

import jax
import jax.numpy as jnp
from jax.experimental import pallas as pl
from jax.experimental.pallas import tpu as pltpu


def _round_up(x, m):
    return (x + m - 1) // m * m


def _int_pow(x, n):
    """x**n for a small non-negative integer n via a VPU multiply chain."""
    if n == 0:
        return jnp.ones_like(x)
    acc = x
    for _ in range(n - 1):
        acc = acc * x
    return acc


def _pow(x, gamma):
    g = float(gamma)
    if g.is_integer() and 0.0 <= g <= 8.0:
        return _int_pow(x, int(g))
    # Non-integer gamma: generic pow (exp/log path).  Clamp to >= 0 because
    # the approximate reciprocal can make p exceed 1 by a few ulps.
    return jnp.maximum(x, 0.0) ** g


def _nfl_kernel(x_ref, t_ref, o_ref, *, gamma, scale, total_n, tile_n):
    # x_ref: (C, tile_n) class-major logits slab (classes on sublanes, batch
    #        on the 128-wide lane axis).
    # t_ref: (1, tile_n) int32 targets.
    # o_ref: (1, tile_n) f32 per-sample losses (padded/out-of-range lanes -> 0).
    x = x_ref[...].astype(jnp.float32)                          # (C, tn)
    tgt = t_ref[...]                                            # (1, tn)

    # --- log_softmax over classes without materializing logpt ---
    #   z = x - max_c x ;  s = sum_c exp(z) ;  logpt = z - log(s)
    m = jnp.max(x, axis=0, keepdims=True)                       # (1, tn)
    z = x - m                                                   # (C, tn)
    e = jnp.exp(z)                                              # single full-tile exp
    s = jnp.sum(e, axis=0, keepdims=True)                       # (1, tn)

    # Softmax denominator reciprocal on the EUP (vrcp), plus one Newton step
    # on the (1, tn) row only to restore ~f32 accuracy of the focal weights.
    inv_s = pl.reciprocal(s, approx=True)
    inv_s = inv_s * (2.0 - s * inv_s)
    log_s = jnp.log(s)                                          # (1, tn)

    p = e * inv_s                                               # == exp(logpt)
    w = _pow(1.0 - p, gamma)                                    # (C, tn)

    # normalizor = sum_c -(1-p)^g * (z - log s)
    #            = log(s) * sum_c w - sum_c (w * z)
    sum_w = jnp.sum(w, axis=0, keepdims=True)                   # (1, tn)
    sum_wz = jnp.sum(w * z, axis=0, keepdims=True)              # (1, tn)
    normalizor = log_s * sum_w - sum_wz                         # (1, tn)

    # --- gather z at the target class via a one-hot sublane mask ---
    # (VPU compare/select + cross-sublane reduce; deliberately no MXU.)
    cls = jax.lax.broadcasted_iota(jnp.int32, x.shape, 0)       # (C, tn)
    z_t = jnp.sum(jnp.where(cls == tgt, z, 0.0), axis=0, keepdims=True)
    logpt_t = z_t - log_s                                       # (1, tn)

    pt = jnp.exp(logpt_t)                                       # (1, tn)
    loss = (-scale) * _pow(1.0 - pt, gamma) * logpt_t / normalizor

    # --- mask batch-padding / out-of-range lanes (must stay last) ---
    col = (jax.lax.broadcasted_iota(jnp.int32, loss.shape, 1)
           + pl.program_id(0) * tile_n)
    loss = jnp.where(col < total_n, loss, 0.0)

    o_ref[...] = loss.astype(o_ref.dtype)


def _vmem_budget_bytes():
    """Generation-aware VMEM budget for the kernel's working set."""
    try:
        cap = int(pltpu.get_tpu_info().vmem_capacity_bytes)
    except Exception:
        cap = 64 * 1024 * 1024          # assume the smallest (v7x-class) VMEM
    # ~25% headroom: 48 MiB on 64 MiB parts (v7x), 64 MiB on 128 MiB parts.
    return min((cap // 4) * 3, 64 * 1024 * 1024)


def _choose_tile_n(n_pad, c, in_itemsize, budget):
    """Largest lane tile whose double-buffered blocks + f32 temporaries fit."""
    c_pad = _round_up(max(c, 1), 8)          # sublane padding of the class axis
    bytes_per_lane = (
        2 * c_pad * in_itemsize              # double-buffered logits block
        + 6 * c_pad * 4                      # live full-tile f32 temps (z,e,p,w,...)
        + 2 * 8 * 4                          # double-buffered int32 target row
        + 2 * 8 * 4                          # double-buffered f32 output row
        + 8 * 8 * 4                          # (1, tile_n) f32 row temporaries
    )
    t_vmem = max(128, (budget // bytes_per_lane) // 128 * 128)
    # Aim for >= 8 grid steps on large batches (keeps both v7x TensorCores
    # busy and the pipeline deep) but never shrink blocks below 8192 lanes,
    # where the ~0.35us per-grid-step overhead starts to dominate.
    split = _round_up(pl.cdiv(n_pad, 8), 128)
    tile_n = min(t_vmem, 65536, max(split, 8192), n_pad)
    return max(tile_n, 128)


def normalized_focal_loss(logits, target, *, scale=1.0, gamma=0.0,
                          size_average=True, tile_n=None, class_major=False):
    """Forward pass of NormalizedFocalLoss.

    logits: [N, C] floats (or [C, N] with class_major=True), f32 or bf16.
    target: [N] integer class ids.  Returns a scalar f32 loss.

    For zero extra HBM traffic feed class-major logits (class_major=True),
    e.g. by folding the transpose into the producing matmul's output layout.
    Otherwise the wrapper performs exactly one XLA copy ([N,C] -> [C,N], plus
    padding to the next multiple of 128 only for ragged batches).
    """
    if class_major:
        C, N = logits.shape
        x_cn = logits
    else:
        N, C = logits.shape
        x_cn = logits.T                       # single XLA transpose copy

    n_pad = _round_up(N, 128)
    if n_pad != N:                            # ragged batch: pad the lane axis
        x_cn = jnp.pad(x_cn, ((0, 0), (0, n_pad - N)))
        tgt = jnp.pad(target.astype(jnp.int32), (0, n_pad - N))
    else:
        tgt = target.astype(jnp.int32)
    tgt = tgt.reshape(1, n_pad)

    budget = _vmem_budget_bytes()
    if tile_n is None:
        tile_n = _choose_tile_n(n_pad, C, jnp.dtype(logits.dtype).itemsize,
                                budget)
    assert tile_n % 128 == 0, "tile_n must be a multiple of 128"
    # TODO(synk): extremely large num_classes (C_pad * tile_n * 4B approaching
    # the VMEM budget even at tile_n=128) would additionally need class-axis
    # tiling with an online softmax.

    grid = pl.cdiv(n_pad, tile_n)             # partial last block is masked

    kernel = functools.partial(_nfl_kernel, gamma=float(gamma),
                               scale=float(scale), total_n=N, tile_n=tile_n)

    per_sample = pl.pallas_call(
        kernel,
        out_shape=jax.ShapeDtypeStruct((1, n_pad), jnp.float32),
        grid_spec=pltpu.PrefetchScalarGridSpec(
            num_scalar_prefetch=0,
            grid=(grid,),
            in_specs=[
                # Default double-buffering hides the DMA at these block
                # sizes; switch to pipeline_mode=pl.Buffered(3) only if an
                # xprof trace shows exposed copies (e.g. on v5e's lower HBM BW).
                pl.BlockSpec((C, tile_n), lambda i: (0, i)),
                pl.BlockSpec((1, tile_n), lambda i: (0, i)),
            ],
            out_specs=pl.BlockSpec((1, tile_n), lambda i: (0, i)),
        ),
        compiler_params=pltpu.CompilerParams(
            dimension_semantics=("parallel",),
            vmem_limit_bytes=budget,
        ),
    )(x_cn, tgt)

    total = jnp.sum(per_sample)
    return total / jnp.float32(N) if size_average else total


def _reference(logits, target, *, scale=1.0, gamma=0.0, size_average=True):
    logits = logits.astype(jnp.float32)
    logpt = jax.nn.log_softmax(logits, axis=1)
    normalizor = jnp.sum(-((1.0 - jnp.exp(logpt)) ** gamma) * logpt, axis=1)
    logpt_t = jnp.take_along_axis(logpt, target.reshape(-1, 1), axis=1).reshape(-1)
    pt = jnp.exp(logpt_t)
    loss = -((1.0 - pt) ** gamma) * logpt_t
    loss = scale * loss / normalizor
    return loss.mean() if size_average else loss.sum()


if __name__ == "__main__":
    key = jax.random.PRNGKey(0)
    k1, k2, k3, k4 = jax.random.split(key, 4)

    # Case 1: batch=32, num_classes=10 (module defaults), gamma=2, mean.
    N, C = 32, 10
    logits = jax.random.normal(k1, (N, C), dtype=jnp.float32)
    target = jax.random.randint(k2, (N,), 0, C, dtype=jnp.int32)
    out = normalized_focal_loss(logits, target, scale=1.0, gamma=2.0,
                                size_average=True)
    out = jax.block_until_ready(out)
    ref = _reference(logits, target, scale=1.0, gamma=2.0, size_average=True)
    assert jnp.allclose(out, ref, rtol=1e-5, atol=1e-5), (out, ref)

    # Case 2: ragged batch + multi-step grid (explicit small tile), gamma=0, sum.
    N2, C2 = 300, 10
    logits2 = jax.random.normal(k3, (N2, C2), dtype=jnp.float32)
    target2 = jax.random.randint(k4, (N2,), 0, C2, dtype=jnp.int32)
    out2 = normalized_focal_loss(logits2, target2, scale=2.0, gamma=0.0,
                                 size_average=False, tile_n=128)
    out2 = jax.block_until_ready(out2)
    ref2 = _reference(logits2, target2, scale=2.0, gamma=0.0, size_average=False)
    assert jnp.allclose(out2, ref2, rtol=1e-5, atol=1e-5), (out2, ref2)

    # Case 3: bf16 logits stay bf16 across the DMA, cast to f32 in-kernel.
    out3 = normalized_focal_loss(logits.astype(jnp.bfloat16), target,
                                 scale=1.0, gamma=2.0, size_average=True)
    out3 = jax.block_until_ready(out3)
    ref3 = _reference(logits.astype(jnp.bfloat16), target,
                      scale=1.0, gamma=2.0, size_average=True)
    assert jnp.allclose(out3, ref3, rtol=1e-4, atol=1e-4), (out3, ref3)

    # Case 4: class-major logits (producer folds the transpose): zero-copy path.
    out4 = normalized_focal_loss(logits.T, target, scale=1.0, gamma=2.0,
                                 size_average=True, class_major=True)
    out4 = jax.block_until_ready(out4)
    assert jnp.allclose(out4, ref, rtol=1e-5, atol=1e-5), (out4, ref)

    # Case 5: non-integer gamma exercises the clamped generic pow path.
    out5 = normalized_focal_loss(logits2, target2, scale=1.0, gamma=1.5,
                                 size_average=True)
    out5 = jax.block_until_ready(out5)
    ref5 = _reference(logits2, target2, scale=1.0, gamma=1.5, size_average=True)
    assert jnp.allclose(out5, ref5, rtol=1e-4, atol=1e-5), (out5, ref5)

    print("KERNEL_OK")
</pallas_src>

<mosaic_0001>
module attributes {stable_mosaic.version = 11 : i64} {
  func.func @_nfl_kernel(%arg0: i32, %arg1: memref<10x128xf32, #tpu.memory_space<vmem>>, %arg2: memref<1x128xi32, #tpu.memory_space<vmem>>, %arg3: memref<1x128xf32, #tpu.memory_space<vmem>>) attributes {dimension_semantics = [#tpu.dimension_semantics<parallel>], iteration_bounds = array<i64: 1>, scalar_prefetch = 0 : i64, scratch_operands = 0 : i64, tpu.core_type = #tpu.core_type<tc>, window_params = [{transform_indices = @transform_0, window_bounds = array<i64: 10, 128>}, {transform_indices = @transform_1, window_bounds = array<i64: 1, 128>}, {transform_indices = @transform_2, window_bounds = array<i64: 1, 128>}]} {
    %c0 = arith.constant 0 : index
    %c0_0 = arith.constant 0 : index
    %0 = vector.load %arg1[%c0, %c0_0] : memref<10x128xf32, #tpu.memory_space<vmem>>, vector<10x128xf32>
    %c0_1 = arith.constant 0 : index
    %c0_2 = arith.constant 0 : index
    %1 = vector.load %arg2[%c0_1, %c0_2] : memref<1x128xi32, #tpu.memory_space<vmem>>, vector<1x128xi32>
    %cst = arith.constant dense<0xFF800000> : vector<128xf32>
    %2 = vector.multi_reduction <maximumf>, %0, %cst [0] : vector<10x128xf32> to vector<128xf32>
    %3 = vector.shape_cast %2 : vector<128xf32> to vector<1x128xf32>
    %4 = vector.broadcast %3 : vector<1x128xf32> to vector<10x128xf32>
    %5 = arith.subf %0, %4 : vector<10x128xf32>
    %6 = math.exp %5 : vector<10x128xf32>
    %cst_3 = arith.constant dense<0.000000e+00> : vector<128xf32>
    %7 = vector.multi_reduction <add>, %6, %cst_3 [0] : vector<10x128xf32> to vector<128xf32>
    %8 = vector.shape_cast %7 : vector<128xf32> to vector<1x128xf32>
    %9 = tpu.reciprocal %8 {approx = true} : vector<1x128xf32> -> vector<1x128xf32>
    %10 = arith.mulf %8, %9 : vector<1x128xf32>
    %cst_4 = arith.constant 2.000000e+00 : f32
    %11 = vector.broadcast %cst_4 : f32 to vector<1x128xf32>
    %12 = arith.subf %11, %10 : vector<1x128xf32>
    %13 = arith.mulf %9, %12 : vector<1x128xf32>
    %14 = math.log %8 : vector<1x128xf32>
    %15 = vector.broadcast %13 : vector<1x128xf32> to vector<10x128xf32>
    %16 = arith.mulf %6, %15 : vector<10x128xf32>
    %cst_5 = arith.constant 1.000000e+00 : f32
    %17 = vector.broadcast %cst_5 : f32 to vector<10x128xf32>
    %18 = arith.subf %17, %16 : vector<10x128xf32>
    %19 = arith.mulf %18, %18 : vector<10x128xf32>
    %cst_6 = arith.constant dense<0.000000e+00> : vector<128xf32>
    %20 = vector.multi_reduction <add>, %19, %cst_6 [0] : vector<10x128xf32> to vector<128xf32>
    %21 = vector.shape_cast %20 : vector<128xf32> to vector<1x128xf32>
    %22 = arith.mulf %19, %5 : vector<10x128xf32>
    %cst_7 = arith.constant dense<0.000000e+00> : vector<128xf32>
    %23 = vector.multi_reduction <add>, %22, %cst_7 [0] : vector<10x128xf32> to vector<128xf32>
    %24 = vector.shape_cast %23 : vector<128xf32> to vector<1x128xf32>
    %25 = arith.mulf %14, %21 : vector<1x128xf32>
    %26 = arith.subf %25, %24 : vector<1x128xf32>
    %27 = tpu.iota {dimensions = array<i32: 0>} : vector<10x128xi32>
    %28 = vector.broadcast %1 : vector<1x128xi32> to vector<10x128xi32>
    %29 = arith.cmpi eq, %27, %28 : vector<10x128xi32>
    %cst_8 = arith.constant 0.000000e+00 : f32
    %30 = vector.broadcast %cst_8 : f32 to vector<10x128xf32>
    %31 = arith.select %29, %5, %30 : vector<10x128xi1>, vector<10x128xf32>
    %cst_9 = arith.constant dense<0.000000e+00> : vector<128xf32>
    %32 = vector.multi_reduction <add>, %31, %cst_9 [0] : vector<10x128xf32> to vector<128xf32>
    %33 = vector.shape_cast %32 : vector<128xf32> to vector<1x128xf32>
    %34 = arith.subf %33, %14 : vector<1x128xf32>
    %35 = math.exp %34 : vector<1x128xf32>
    %cst_10 = arith.constant 1.000000e+00 : f32
    %36 = vector.broadcast %cst_10 : f32 to vector<1x128xf32>
    %37 = arith.subf %36, %35 : vector<1x128xf32>
    %38 = arith.mulf %37, %37 : vector<1x128xf32>
    %cst_11 = arith.constant -1.000000e+00 : f32
    %39 = vector.broadcast %cst_11 : f32 to vector<1x128xf32>
    %40 = arith.mulf %39, %38 : vector<1x128xf32>
    %41 = arith.mulf %40, %34 : vector<1x128xf32>
    %42 = arith.divf %41, %26 : vector<1x128xf32>
    %43 = tpu.iota {dimensions = array<i32: 1>} : vector<1x128xi32>
    %c128_i32 = arith.constant 128 : i32
    %44 = arith.muli %arg0, %c128_i32 : i32
    %45 = vector.broadcast %44 : i32 to vector<1x128xi32>
    %46 = arith.addi %43, %45 : vector<1x128xi32>
    %c32_i32 = arith.constant 32 : i32
    %47 = vector.broadcast %c32_i32 : i32 to vector<1x128xi32>
    %48 = arith.cmpi slt, %46, %47 : vector<1x128xi32>
    %cst_12 = arith.constant 0.000000e+00 : f32
    %49 = vector.broadcast %cst_12 : f32 to vector<1x128xf32>
    %50 = arith.select %48, %42, %49 : vector<1x128xi1>, vector<1x128xf32>
    %c0_13 = arith.constant 0 : index
    %c0_14 = arith.constant 0 : index
    %51 = vector.load %arg3[%c0_13, %c0_14] : memref<1x128xf32, #tpu.memory_space<vmem>>, vector<1x128xf32>
    tpu.vector_store %arg3[%c0_13, %c0_14], %50 {strides = array<i32>} : memref<1x128xf32, #tpu.memory_space<vmem>>, vector<1x128xf32>,
    return
  }
  func.func @transform_0(%arg0: i32) -> (i32, i32) {
    %c0_i32 = arith.constant 0 : i32
    %c0_i32_0 = arith.constant 0 : i32
    return %c0_i32, %arg0 : i32, i32
  }
  func.func @transform_1(%arg0: i32) -> (i32, i32) {
    %c0_i32 = arith.constant 0 : i32
    %c0_i32_0 = arith.constant 0 : i32
    return %c0_i32, %arg0 : i32, i32
  }
  func.func @transform_2(%arg0: i32) -> (i32, i32) {
    %c0_i32 = arith.constant 0 : i32
    %c0_i32_0 = arith.constant 0 : i32
    return %c0_i32, %arg0 : i32, i32
  }
}

</mosaic_0001>

<llo_original>
// kernel: tpu_custom_call.1
$region0: #{tpu_custom_call.1}
  #allocation0 [shape = 'u32[]', space=smem, size = 0x4, offset = 0x4, fixed_abs, tag = 'smem constant byte address 0x4 - core index']
  #allocation1 [shape = 'u32[144,128]{1,0:T(1,128)}', space=vmem, size = 0x12000, scoped, tag = 'internal scratch']
  %s0 = inlined_call_operand.hbm [shape: f32[10,128], index: 0, kind: input, shape index: {}]
  %s1 = inlined_call_operand.vmem [shape: s32[1,128], index: 1, kind: input, shape index: {}]
  %s2 = inlined_call_operand.hbm [shape: f32[1,128], index: 2, kind: output, shape index: {}]
  %s3 = sld [smem:[#allocation0]]
  $region22: #{tpu_custom_call.1} parent=0
    _
  %s5 = ssub.s32 1, %s3
  %s6 = scalar_select 0, %s5, %s3
  $region1: #{tpu_custom_call.1} parent=0
    #allocation2 [shape = 'u8[8192]{0}', space=vmem, size = 0x2000, scoped, tag = 'input window, operand 0, single buffered']
    #allocation3 [shape = 's32[1]{0}', space=sflag, size = 0x4, scoped, tag = 'scoped memory for tpu_custom_call.1']
    #allocation4 [shape = 's32[1]{0}', space=sflag, size = 0x4, scoped, tag = 'scoped memory for tpu_custom_call.1']
    #allocation5 [shape = 'u8[512]{0}', space=vmem, size = 0x400, scoped, tag = 'output window, operand 0, single buffered']
    %7 = vsyncpa [#allocation3], 0
    %8 = vsyncpa [#allocation4], 0
    // Predicated region
    $region2: #{tpu_custom_call.1} parent=1 // pred_check
      _
    $region3: #{tpu_custom_call.1} parent=1 // pred_check_branch
      %10 = sbr.rel (0) target = $region5
    $region4: #{tpu_custom_call.1} parent=1 // pred_region
      %s12 = ssub.s32 256, 256
      %13 = vsyncadd [#allocation3], %s12
      %s14 = sshll.u32 [#allocation2], 4
      %s15 = int_to_ptr.vmem [resolvable:$true] %s14
      %20 = dma.hbm_to_vmem [thread:$0]  %s0, 256, %s15, [#allocation3], 128, 128, 8
    $region5: #{tpu_custom_call.1} parent=1 // pred_fallthru
      _
    // Predicated region
    $region6: #{tpu_custom_call.1} parent=1 // pred_check
      _
    $region7: #{tpu_custom_call.1} parent=1 // pred_check_branch
      %22 = sbr.rel (0) target = $region9
    $region8: #{tpu_custom_call.1} parent=1 // pred_region
      _
    $region9: #{tpu_custom_call.1} parent=1 // pred_fallthru
      _
    // Predicated region
    $region10: #{tpu_custom_call.1} parent=1 // pred_check
      _
    $region11: #{tpu_custom_call.1} parent=1 // pred_check_branch
      %24 = sbr.rel (0) target = $region13
    $region12: #{tpu_custom_call.1} parent=1 // pred_region
      %25 = dma.done [#allocation3], 256
    $region13: #{tpu_custom_call.1} parent=1 // pred_fallthru
      _
    %v26 = vld [vmem:[#allocation2] sm:$0xff]
    %v27 = vld [vmem:[#allocation2 + $0x8] sm:$0x3]
    %v28 = vld [vmem:[%s1] sm:$0x1]
    %vm29 = vcmask 1041408
    %v30 = vsel %vm29, %v27, -inf
    %v31 = vmax.f32 %v26, %v30
    %v32 = vrot.slane %v31, 4
    %v33 = vmax.f32 %v31, %v32
    %v34 = vrot.slane %v33, 2
    %v35 = vmax.f32 %v33, %v34
    %v36 = vrot.slane %v35, 1
    %v37 = vmax.f32 %v35, %v36
    %v38 = vsub.f32 %v26, %v37
    %v39 = vsub.f32 %v27, %v37
    %v40 = vmul.f32 %v38, 1.442695
    %v41 = vpow.pop %v40
    %v42 = vmul.f32 %v39, 1.442695
    %v43 = vpow.pop %v42
    %v44 = vsel %vm29, %v43, 0.0
    %v45 = vadd.f32 %v41, %v44
    %v46 = vrot.slane %v45, 4
    %v47 = vadd.f32 %v45, %v46
    %v48 = vrot.slane %v47, 2
    %v49 = vadd.f32 %v47, %v48
    %v50 = vrot.slane %v49, 1
    %v51 = vadd.f32 %v49, %v50
    %v52 = vrcp.pop %v51
    %v53 = vmul.f32 %v51, %v52
    %v54 = vsub.f32 2.0, %v53
    %v55 = vmul.f32 %v52, %v54
    %v56 = vlog2.pop %v51
    %v57 = vmul.f32 %v56, 0.6931472
    %v58 = vmul.f32 %v41, %v55
    %v59 = vmul.f32 %v43, %v55
    %v60 = vsub.f32 1.0, %v58
    %v61 = vsub.f32 1.0, %v59
    %v62 = vmul.f32 %v60, %v60
    %v63 = vmul.f32 %v61, %v61
    %v64 = vsel %vm29, %v63, 0.0
    %v65 = vadd.f32 %v62, %v64
    %v66 = vrot.slane %v65, 4
    %v67 = vadd.f32 %v65, %v66
    %v68 = vrot.slane %v67, 2
    %v69 = vadd.f32 %v67, %v68
    %v70 = vrot.slane %v69, 1
    %v71 = vadd.f32 %v69, %v70
    %v72 = vmul.f32 %v62, %v38
    %v73 = vmul.f32 %v63, %v39
    %v74 = vsel %vm29, %v73, 0.0
    %v75 = vadd.f32 %v72, %v74
    %v76 = vrot.slane %v75, 4
    %v77 = vadd.f32 %v75, %v76
    %v78 = vrot.slane %v77, 2
    %v79 = vadd.f32 %v77, %v78
    %v80 = vrot.slane %v79, 1
    %v81 = vadd.f32 %v79, %v80
    %v82 = vmul.f32 %v57, %v71
    %v83 = vsub.f32 %v82, %v81
    %v84 = vlaneseq
    %v85 = vshrl.u32 %v84, 7
    %v86 = vadd.s32 %v85, 8
    %v87 = vlaneseq
    %v88 = vshrl.u32 %v87, 7
    %v89 = vsub.s32 0, %v88
    %v90 = vrot.slane %v28, %v89
    %vm91 = vcmp.eq.s32.totalorder %v85, %v90
    %vm92 = vcmp.eq.s32.totalorder %v86, %v90
    %v93 = vsel %vm91, %v38, 0.0
    %v94 = vsel %vm92, %v39, 0.0
    %v95 = vsel %vm29, %v94, 0.0
    %v96 = vadd.f32 %v93, %v95
    %v97 = vrot.slane %v96, 4
    %v98 = vadd.f32 %v96, %v97
    %v99 = vrot.slane %v98, 2
    %v100 = vadd.f32 %v98, %v99
    %v101 = vrot.slane %v100, 1
    %v102 = vadd.f32 %v100, %v101
    %v103 = vsub.f32 %v102, %v57
    %v104 = vmul.f32 %v103, 1.442695
    %v105 = vpow.pop %v104
    %v106 = vsub.f32 1.0, %v105
    %v107 = vmul.f32 %v106, %v106
    %v108 = vmul.f32 %v107, -1.0
    %v109 = vmul.f32 %v108, %v103
    %v110 = vrcp.pop %v83
    %v111 = vmul.f32 %v109, %v110
    %v112 = vlaneseq
    %v113 = vand.u32 %v112, 127
    %s114 = smul.u32 0, 128
    %v115 = vstv %s114
    %v116 = vadd.s32 %v113, %v115
    %vm117 = vcmp.lt.s32.totalorder %v116, 32
    %v118 = vsel %vm117, %v111, 0.0
    %119 = vst [vmem:[#allocation5] sm:$0x1] %v118
    // Predicated region
    $region14: #{tpu_custom_call.1} parent=1 // pred_check
      _
    $region15: #{tpu_custom_call.1} parent=1 // pred_check_branch
      %121 = sbr.rel (0) target = $region17
    $region16: #{tpu_custom_call.1} parent=1 // pred_region
      %s123 = ssub.s32 16, 16
      %124 = vsyncadd [#allocation4], %s123
      %s126 = sshll.u32 [#allocation5], 4
      %s127 = int_to_ptr.vmem [resolvable:$true] %s126
      %129 = dma.vmem_to_hbm [thread:$0]  %s127, 16, %s2, [#allocation4]
    $region17: #{tpu_custom_call.1} parent=1 // pred_fallthru
      _
    // Predicated region
    $region18: #{tpu_custom_call.1} parent=1 // pred_check
      _
    $region19: #{tpu_custom_call.1} parent=1 // pred_check_branch
      %131 = sbr.rel (0) target = $region21
    $region20: #{tpu_custom_call.1} parent=1 // pred_region
      %132 = dma.done [#allocation4], 16
    $region21: #{tpu_custom_call.1} parent=1 // pred_fallthru
      _
    %133 = vsyncpa [#allocation3], 1
    %134 = vsyncpa [#allocation4], 1

</llo_original>
